<compile_context>
chip_gen: v7x
topology: tpu7x:2x2x1
jax: 0.10.0
libtpu: 0.0.40
codegen_flags: <defaults>
</compile_context>

<pallas_src>
import functools

import jax
import jax.numpy as jnp
from jax import lax
from jax.experimental import pallas as pl
from jax.experimental.pallas import tpu as pltpu

LANE = 128
SUBLANE = 8
CHUNK_ROWS = 512                        # in-kernel compute chunk (bounds temporaries)
TARGET_TILE_BYTES = 4 * 1024 * 1024     # ~4 MiB per input DMA buffer
VMEM_LIMIT_BYTES = 32 * 1024 * 1024     # 16 MiB of input buffers + small temps << limit
SMALL_BYPASS_ELEMS = 65536              # below this, launch overhead dominates the work


def _num_tensorcores():
    """2 on multi-TensorCore chips (v7x); v5e / v6e are single-TC per chip."""
    try:
        kind = jax.devices()[0].device_kind.lower()
    except Exception:
        return 1
    return 2 if "v7" in kind else 1


def _mse_sum_kernel(x_ref, y_ref, o_ref, *, row_tile, chunk, rows_valid,
                    tiles_per_core):
    # x_ref, y_ref : (row_tile, LANE) tiles of the flattened inputs (native dtype)
    # o_ref        : (SUBLANE, LANE) f32 per-core partial-sum accumulator
    c = pl.program_id(0)
    t = pl.program_id(1)

    @pl.when(t == 0)
    def _():
        o_ref[...] = jnp.zeros_like(o_ref)

    n_chunks = row_tile // chunk                     # static
    # Logical (unclamped) first row of this tile; dummy clamped tiles land past
    # rows_valid and are fully masked below.
    base_row = (c * tiles_per_core + t) * row_tile
    ragged = base_row + row_tile > rows_valid

    def fold(dsq):
        # (chunk, LANE) -> (SUBLANE, LANE): tile-aligned reshape + vreg-wise VPU
        # adds; the expensive cross-lane reduce happens once, in the wrapper.
        return dsq.reshape(chunk // SUBLANE, SUBLANE, LANE).sum(axis=0)

    @pl.when(jnp.logical_not(ragged))
    def _():
        # Steady-state path: no iota / mask / select.
        @pl.loop(0, n_chunks)
        def _(i):
            off = pl.multiple_of(i * chunk, chunk)
            x = x_ref[pl.ds(off, chunk), :].astype(jnp.float32)
            y = y_ref[pl.ds(off, chunk), :].astype(jnp.float32)
            d = x - y
            o_ref[...] += fold(d * d)

    @pl.when(ragged)
    def _():
        # Only the last (or dummy clamped) tile pays for the row mask.
        @pl.loop(0, n_chunks)
        def _(i):
            off = pl.multiple_of(i * chunk, chunk)
            x = x_ref[pl.ds(off, chunk), :].astype(jnp.float32)
            y = y_ref[pl.ds(off, chunk), :].astype(jnp.float32)
            d = x - y
            row_ids = (base_row + off) + lax.broadcasted_iota(
                jnp.int32, (chunk, LANE), 0)
            dsq = jnp.where(row_ids < rows_valid, d * d, 0.0)
            o_ref[...] += fold(dsq)


def mse_loss(inp, target, *, target_tile_bytes=TARGET_TILE_BYTES,
             max_tile_rows=None, small_bypass_elems=SMALL_BYPASS_ELEMS,
             ncores=None):
    """mean((inp - target)**2), matching torch.nn.MSELoss('mean')."""
    assert inp.shape == target.shape, (inp.shape, target.shape)
    assert inp.dtype == target.dtype, (inp.dtype, target.dtype)
    n_true = inp.size

    x = inp.reshape(-1)
    y = target.reshape(-1)

    itemsize = jnp.dtype(inp.dtype).itemsize
    sublane_mult = max(SUBLANE, 32 // itemsize)     # 8 f32, 16 bf16, 32 int8
    group = sublane_mult * LANE

    # Tiny-input bypass: fixed pallas_call / grid overhead would dominate.
    if n_true < max(small_bypass_elems, group):
        d = x.astype(jnp.float32) - y.astype(jnp.float32)
        return jnp.sum(d * d) / n_true

    # Ragged element counts: run the kernel over the group-aligned prefix and
    # add the (< group)-element tail in the wrapper.  No full-array jnp.pad.
    n_aligned = (n_true // group) * group
    tail_sum = jnp.zeros((), jnp.float32)
    if n_aligned != n_true:
        xt = x[n_aligned:].astype(jnp.float32)
        yt = y[n_aligned:].astype(jnp.float32)
        dt = xt - yt
        tail_sum = jnp.sum(dt * dt)
        x = x[:n_aligned]
        y = y[:n_aligned]

    rows = n_aligned // LANE                        # multiple of sublane_mult
    x2 = x.reshape(rows, LANE)                      # metadata-only reshape
    y2 = y.reshape(rows, LANE)

    # Compute chunk (bounds in-kernel temporaries) and DMA tile (amortizes the
    # per-grid-step overhead); chunk | row_tile and both respect dtype packing.
    chunk = min(CHUNK_ROWS, rows)
    if max_tile_rows is not None:
        chunk = min(chunk, max_tile_rows)
    chunk = max(sublane_mult, (chunk // sublane_mult) * sublane_mult)

    tgt_rows = max(chunk, (target_tile_bytes // (LANE * itemsize)) // chunk * chunk)
    if max_tile_rows is not None:
        tgt_rows = min(tgt_rows, max(chunk, (max_tile_rows // chunk) * chunk))
    row_tile = min(tgt_rows, max(chunk, (rows // chunk) * chunk))

    tiles = pl.cdiv(rows, row_tile)

    if ncores is None:
        ncores = _num_tensorcores()
    ncores = max(1, min(ncores, tiles))
    if ncores > 1 and tiles % ncores:
        # Shave the tile so the grid splits evenly across cores (avoids dummy
        # full-tile DMA re-reads in the common case).
        tiles = pl.cdiv(tiles, ncores) * ncores
        row_tile = pl.cdiv(pl.cdiv(rows, tiles), chunk) * chunk
    tiles_per_core = tiles // ncores
    real_tiles = pl.cdiv(rows, row_tile)            # may be < tiles in corner cases

    if real_tiles == tiles:
        def in_map(c, t):
            return (c * tiles_per_core + t, 0)
    else:
        last = real_tiles - 1

        def in_map(c, t):
            # Dummy trailing tiles re-read the last real block; their
            # contribution is masked to zero inside the kernel.
            return (jnp.minimum(c * tiles_per_core + t, last), 0)

    kernel = functools.partial(
        _mse_sum_kernel,
        row_tile=row_tile,
        chunk=chunk,
        rows_valid=rows,
        tiles_per_core=tiles_per_core,
    )

    cost = pl.CostEstimate(
        flops=3 * n_aligned,
        transcendentals=0,
        bytes_accessed=2 * n_aligned * itemsize + ncores * SUBLANE * LANE * 4,
    )

    partials = pl.pallas_call(
        kernel,
        out_shape=jax.ShapeDtypeStruct((ncores * SUBLANE, LANE), jnp.float32),
        grid_spec=pltpu.PrefetchScalarGridSpec(
            num_scalar_prefetch=0,
            grid=(ncores, tiles_per_core),
            in_specs=[
                pl.BlockSpec((row_tile, LANE), in_map),
                pl.BlockSpec((row_tile, LANE), in_map),
            ],
            out_specs=pl.BlockSpec((SUBLANE, LANE), lambda c, t: (c, 0)),
        ),
        compiler_params=pltpu.CompilerParams(
            dimension_semantics=("parallel", "arbitrary"),
            vmem_limit_bytes=VMEM_LIMIT_BYTES,
        ),
        cost_estimate=cost,
    )(x2, y2)

    # Tiny final cross-lane reduce + exact mean (unpadded element count).
    return (partials.sum() + tail_sum) / n_true


if __name__ == "__main__":
    key = jax.random.PRNGKey(0)
    k1, k2, k3, k4, k5, k6, k7, k8 = jax.random.split(key, 8)

    # Primary NCHW shape consistent with an image-regression loss.  Force the
    # kernel path (the tiny-input bypass would otherwise handle it directly).
    inp = jax.random.normal(k1, (2, 4, 16, 16), dtype=jnp.float32)
    tgt = jax.random.normal(k2, (2, 4, 16, 16), dtype=jnp.float32)
    loss = mse_loss(inp, tgt, small_bypass_elems=0)
    jax.block_until_ready(loss)
    ref = jnp.mean((inp - tgt) ** 2)
    assert jnp.allclose(loss, ref, rtol=1e-5, atol=1e-6), (loss, ref)

    # Default settings on the same shape hit the bypass; must agree.
    loss_bp = mse_loss(inp, tgt)
    assert jnp.allclose(loss_bp, ref, rtol=1e-5, atol=1e-6), (loss_bp, ref)

    # Ragged element count: kernel covers the aligned prefix, wrapper adds tail.
    a = jax.random.normal(k3, (2, 3, 17, 19), dtype=jnp.float32)
    b = jax.random.normal(k4, (2, 3, 17, 19), dtype=jnp.float32)
    l2 = mse_loss(a, b, small_bypass_elems=0)
    r2 = jnp.mean((a - b) ** 2)
    assert jnp.allclose(l2, r2, rtol=1e-5, atol=1e-6), (l2, r2)

    # Multi-tile accumulation (+ 2-core split / dummy-tile clamp path on v7x).
    c = jax.random.normal(k5, (3, 4, 16, 16), dtype=jnp.float32)
    d = jax.random.normal(k6, (3, 4, 16, 16), dtype=jnp.float32)
    l3 = mse_loss(c, d, small_bypass_elems=0, max_tile_rows=8)
    r3 = jnp.mean((c - d) ** 2)
    assert jnp.allclose(l3, r3, rtol=1e-5, atol=1e-6), (l3, r3)

    # Default settings on a shape large enough to exercise the multi-chunk
    # in-kernel loop and a ragged (masked) last tile.
    e = jax.random.normal(k7, (2, 4, 160, 128), dtype=jnp.float32)
    f = jax.random.normal(k8, (2, 4, 160, 128), dtype=jnp.float32)
    l4 = mse_loss(e, f)
    r4 = jnp.mean((e - f) ** 2)
    assert jnp.allclose(l4, r4, rtol=1e-5, atol=1e-6), (l4, r4)

    print("KERNEL_OK")
</pallas_src>

<mosaic_0001>
module attributes {stable_mosaic.version = 11 : i64} {
  func.func @_mse_sum_kernel(%arg0: i32, %arg1: i32, %arg2: memref<16x128xf32, #tpu.memory_space<vmem>>, %arg3: memref<16x128xf32, #tpu.memory_space<vmem>>, %arg4: memref<8x128xf32, #tpu.memory_space<vmem>>) attributes {dimension_semantics = [#tpu.dimension_semantics<parallel>, #tpu.dimension_semantics<arbitrary>], iteration_bounds = array<i64: 1, 1>, scalar_prefetch = 0 : i64, scratch_operands = 0 : i64, tpu.core_type = #tpu.core_type<tc>, window_params = [{transform_indices = @transform_0, window_bounds = array<i64: 16, 128>}, {transform_indices = @transform_1, window_bounds = array<i64: 16, 128>}, {transform_indices = @transform_2, window_bounds = array<i64: 8, 128>}]} {
    %c0_i32 = arith.constant 0 : i32
    %0 = arith.cmpi eq, %arg1, %c0_i32 : i32
    %1 = arith.extui %0 : i1 to i32
    %c0_i32_0 = arith.constant 0 : i32
    %2 = arith.cmpi ne, %1, %c0_i32_0 : i32
    scf.if %2 {
      %cst = arith.constant 0.000000e+00 : f32
      %13 = vector.broadcast %cst : f32 to vector<8x128xf32>
      %c0 = arith.constant 0 : index
      %c0_5 = arith.constant 0 : index
      %14 = vector.load %arg4[%c0, %c0_5] : memref<8x128xf32, #tpu.memory_space<vmem>>, vector<8x128xf32>
      tpu.vector_store %arg4[%c0, %c0_5], %13 {strides = array<i32>} : memref<8x128xf32, #tpu.memory_space<vmem>>, vector<8x128xf32>,
    } else {
    }
    %c1_i32 = arith.constant 1 : i32
    %3 = arith.muli %arg0, %c1_i32 : i32
    %4 = arith.addi %3, %arg1 : i32
    %c16_i32 = arith.constant 16 : i32
    %5 = arith.muli %4, %c16_i32 : i32
    %c16_i32_1 = arith.constant 16 : i32
    %6 = arith.addi %5, %c16_i32_1 : i32
    %c16_i32_2 = arith.constant 16 : i32
    %7 = arith.cmpi sgt, %6, %c16_i32_2 : i32
    %true = arith.constant true
    %8 = arith.xori %7, %true : i1
    %9 = arith.extui %8 : i1 to i32
    %c0_i32_3 = arith.constant 0 : i32
    %10 = arith.cmpi ne, %9, %c0_i32_3 : i32
    scf.if %10 {
      %c0_i32_5 = arith.constant 0 : i32
      %c1_i32_6 = arith.constant 1 : i32
      %13 = arith.muli %c0_i32_5, %c1_i32_6 : i32
      %c0_i32_7 = arith.constant 0 : i32
      %14 = arith.addi %c0_i32_7, %13 : i32
      %c16_i32_8 = arith.constant 16 : i32
      %15 = arith.muli %14, %c16_i32_8 : i32
      %16 = tpu.assume_multiple %15, 16 : i32
      %17 = arith.index_cast %16 : i32 to index
      %c0 = arith.constant 0 : index
      %18 = vector.load %arg2[%17, %c0] : memref<16x128xf32, #tpu.memory_space<vmem>>, vector<16x128xf32>
      %19 = arith.index_cast %16 : i32 to index
      %c0_9 = arith.constant 0 : index
      %20 = vector.load %arg3[%19, %c0_9] : memref<16x128xf32, #tpu.memory_space<vmem>>, vector<16x128xf32>
      %21 = arith.subf %18, %20 : vector<16x128xf32>
      %c0_10 = arith.constant 0 : index
      %c0_11 = arith.constant 0 : index
      %22 = vector.load %arg4[%c0_10, %c0_11] : memref<8x128xf32, #tpu.memory_space<vmem>>, vector<8x128xf32>
      %23 = arith.mulf %21, %21 : vector<16x128xf32>
      %24 = vector.shape_cast %23 : vector<16x128xf32> to vector<2x8x128xf32>
      %cst = arith.constant dense<0.000000e+00> : vector<8x128xf32>
      %25 = vector.multi_reduction <add>, %24, %cst [0] : vector<2x8x128xf32> to vector<8x128xf32>
      %26 = arith.addf %22, %25 : vector<8x128xf32>
      %c0_12 = arith.constant 0 : index
      %c0_13 = arith.constant 0 : index
      %27 = vector.load %arg4[%c0_12, %c0_13] : memref<8x128xf32, #tpu.memory_space<vmem>>, vector<8x128xf32>
      tpu.vector_store %arg4[%c0_12, %c0_13], %26 {strides = array<i32>} : memref<8x128xf32, #tpu.memory_space<vmem>>, vector<8x128xf32>,
      %c1_i32_14 = arith.constant 1 : i32
    } else {
    }
    %11 = arith.extui %7 : i1 to i32
    %c0_i32_4 = arith.constant 0 : i32
    %12 = arith.cmpi ne, %11, %c0_i32_4 : i32
    scf.if %12 {
      %c0_i32_5 = arith.constant 0 : i32
      %c1_i32_6 = arith.constant 1 : i32
      %13 = arith.muli %c0_i32_5, %c1_i32_6 : i32
      %c0_i32_7 = arith.constant 0 : i32
      %14 = arith.addi %c0_i32_7, %13 : i32
      %c16_i32_8 = arith.constant 16 : i32
      %15 = arith.muli %14, %c16_i32_8 : i32
      %16 = tpu.assume_multiple %15, 16 : i32
      %17 = arith.index_cast %16 : i32 to index
      %c0 = arith.constant 0 : index
      %18 = vector.load %arg2[%17, %c0] : memref<16x128xf32, #tpu.memory_space<vmem>>, vector<16x128xf32>
      %19 = arith.index_cast %16 : i32 to index
      %c0_9 = arith.constant 0 : index
      %20 = vector.load %arg3[%19, %c0_9] : memref<16x128xf32, #tpu.memory_space<vmem>>, vector<16x128xf32>
      %21 = arith.subf %18, %20 : vector<16x128xf32>
      %22 = arith.addi %5, %16 : i32
      %23 = tpu.iota {dimensions = array<i32: 0>} : vector<16x128xi32>
      %24 = vector.broadcast %22 : i32 to vector<16x128xi32>
      %25 = arith.addi %24, %23 : vector<16x128xi32>
      %c16_i32_10 = arith.constant 16 : i32
      %26 = vector.broadcast %c16_i32_10 : i32 to vector<16x128xi32>
      %27 = arith.cmpi slt, %25, %26 : vector<16x128xi32>
      %28 = arith.mulf %21, %21 : vector<16x128xf32>
      %cst = arith.constant 0.000000e+00 : f32
      %29 = vector.broadcast %cst : f32 to vector<16x128xf32>
      %30 = arith.select %27, %28, %29 : vector<16x128xi1>, vector<16x128xf32>
      %c0_11 = arith.constant 0 : index
      %c0_12 = arith.constant 0 : index
      %31 = vector.load %arg4[%c0_11, %c0_12] : memref<8x128xf32, #tpu.memory_space<vmem>>, vector<8x128xf32>
      %32 = vector.shape_cast %30 : vector<16x128xf32> to vector<2x8x128xf32>
      %cst_13 = arith.constant dense<0.000000e+00> : vector<8x128xf32>
      %33 = vector.multi_reduction <add>, %32, %cst_13 [0] : vector<2x8x128xf32> to vector<8x128xf32>
      %34 = arith.addf %31, %33 : vector<8x128xf32>
      %c0_14 = arith.constant 0 : index
      %c0_15 = arith.constant 0 : index
      %35 = vector.load %arg4[%c0_14, %c0_15] : memref<8x128xf32, #tpu.memory_space<vmem>>, vector<8x128xf32>
      tpu.vector_store %arg4[%c0_14, %c0_15], %34 {strides = array<i32>} : memref<8x128xf32, #tpu.memory_space<vmem>>, vector<8x128xf32>,
      %c1_i32_16 = arith.constant 1 : i32
    } else {
    }
    return
  }
  func.func @transform_0(%arg0: i32, %arg1: i32) -> (i32, i32) {
    %c1_i32 = arith.constant 1 : i32
    %0 = arith.muli %arg0, %c1_i32 : i32
    %1 = arith.addi %0, %arg1 : i32
    %c0_i32 = arith.constant 0 : i32
    %c0_i32_0 = arith.constant 0 : i32
    return %1, %c0_i32 : i32, i32
  }
  func.func @transform_1(%arg0: i32, %arg1: i32) -> (i32, i32) {
    %c1_i32 = arith.constant 1 : i32
    %0 = arith.muli %arg0, %c1_i32 : i32
    %1 = arith.addi %0, %arg1 : i32
    %c0_i32 = arith.constant 0 : i32
    %c0_i32_0 = arith.constant 0 : i32
    return %1, %c0_i32 : i32, i32
  }
  func.func @transform_2(%arg0: i32, %arg1: i32) -> (i32, i32) {
    %c0_i32 = arith.constant 0 : i32
    %c0_i32_0 = arith.constant 0 : i32
    return %arg0, %c0_i32 : i32, i32
  }
}

</mosaic_0001>

<llo_original>
// kernel: tpu_custom_call.1
$region0: #{tpu_custom_call.1}
  #allocation0 [shape = 'u32[]', space=smem, size = 0x4, offset = 0x4, fixed_abs, tag = 'smem constant byte address 0x4 - core index']
  #allocation1 [shape = 'u32[144,128]{1,0:T(1,128)}', space=vmem, size = 0x12000, scoped, tag = 'internal scratch']
  %s0 = inlined_call_operand.hbm [shape: f32[16,128], index: 0, kind: input, shape index: {}]
  %s1 = inlined_call_operand.hbm [shape: f32[16,128], index: 1, kind: input, shape index: {}]
  %s2 = inlined_call_operand.hbm [shape: f32[8,128], index: 2, kind: output, shape index: {}]
  %s3 = sld [smem:[#allocation0]]
  $region38: #{tpu_custom_call.1} parent=0
    _
  %s5 = ssub.s32 1, %s3
  %s6 = scalar_select 0, %s5, %s3
  $region1: #{tpu_custom_call.1} parent=0
    #allocation2 [shape = 'u8[8192]{0}', space=vmem, size = 0x2000, scoped, tag = 'input window, operand 0, single buffered']
    #allocation3 [shape = 's32[1]{0}', space=sflag, size = 0x4, scoped, tag = 'scoped memory for tpu_custom_call.1']
    #allocation4 [shape = 's32[1]{0}', space=sflag, size = 0x4, scoped, tag = 'scoped memory for tpu_custom_call.1']
    #allocation5 [shape = 'u8[8192]{0}', space=vmem, size = 0x2000, scoped, tag = 'input window, operand 1, single buffered']
    #allocation6 [shape = 's32[1]{0}', space=sflag, size = 0x4, scoped, tag = 'scoped memory for tpu_custom_call.1']
    #allocation7 [shape = 'u8[4096]{0}', space=vmem, size = 0x1000, scoped, tag = 'output window, operand 0, single buffered']
    %7 = vsyncpa [#allocation3], 0
    %8 = vsyncpa [#allocation6], 0
    %9 = vsyncpa [#allocation4], 0
    // Predicated region
    $region2: #{tpu_custom_call.1} parent=1 // pred_check
      _
    $region3: #{tpu_custom_call.1} parent=1 // pred_check_branch
      %11 = sbr.rel (0) target = $region5
    $region4: #{tpu_custom_call.1} parent=1 // pred_region
      %s12 = sadd.s32 0, 0
      %s13 = smul.u32 2, %s12
      %s15 = ssub.s32 256, 256
      %16 = vsyncadd [#allocation3], %s15
      %s17 = smul.addr %s13, 128
      %s18 = scalar_lea.hbm %s0, %s17
      %s19 = sshll.u32 [#allocation2], 4
      %s20 = int_to_ptr.vmem [resolvable:$true] %s19
      %25 = dma.hbm_to_vmem [thread:$0]  %s18, 256, %s20, [#allocation3], 128, 128, 8
    $region5: #{tpu_custom_call.1} parent=1 // pred_fallthru
      _
    // Predicated region
    $region6: #{tpu_custom_call.1} parent=1 // pred_check
      _
    $region7: #{tpu_custom_call.1} parent=1 // pred_check_branch
      %27 = sbr.rel (0) target = $region9
    $region8: #{tpu_custom_call.1} parent=1 // pred_region
      %s28 = sadd.s32 0, 0
      %s29 = smul.u32 2, %s28
      %s31 = ssub.s32 256, 256
      %32 = vsyncadd [#allocation6], %s31
      %s33 = smul.addr %s29, 128
      %s34 = scalar_lea.hbm %s1, %s33
      %s35 = sshll.u32 [#allocation5], 4
      %s36 = int_to_ptr.vmem [resolvable:$true] %s35
      %41 = dma.hbm_to_vmem [thread:$0]  %s34, 256, %s36, [#allocation6], 128, 128, 8
    $region9: #{tpu_custom_call.1} parent=1 // pred_fallthru
      _
    // Predicated region
    $region10: #{tpu_custom_call.1} parent=1 // pred_check
      _
    $region11: #{tpu_custom_call.1} parent=1 // pred_check_branch
      %43 = sbr.rel (0) target = $region13
    $region12: #{tpu_custom_call.1} parent=1 // pred_region
      %44 = dma.done [#allocation3], 256
    $region13: #{tpu_custom_call.1} parent=1 // pred_fallthru
      _
    // Predicated region
    $region14: #{tpu_custom_call.1} parent=1 // pred_check
      _
    $region15: #{tpu_custom_call.1} parent=1 // pred_check_branch
      %46 = sbr.rel (0) target = $region17
    $region16: #{tpu_custom_call.1} parent=1 // pred_region
      %47 = dma.done [#allocation6], 256
    $region17: #{tpu_custom_call.1} parent=1 // pred_fallthru
      _
    %s48 = sadd.s32 0, 0
    %s49 = smul.u32 2, %s48
    %s50 = sadd.s32 0, 0
    %s51 = smul.u32 2, %s50
    %p52 = scmp.eq.s32.totalorder 0, 0
    // Predicated region
    $region18: #{tpu_custom_call.1} parent=1 // pred_check
      %p53 = pneg %p52
    $region19: #{tpu_custom_call.1} parent=1 // pred_check_branch
      %55 = sbr.rel (%p53) target = $region21
    $region20: #{tpu_custom_call.1} parent=1 // pred_region
      %56 = vst [vmem:[#allocation7] sm:$0xff] 0.0
    $region21: #{tpu_custom_call.1} parent=1 // pred_fallthru
      _
    %s57 = sadd.s32 0, 0
    %s58 = smul.u32 %s57, 16
    %s59 = sadd.s32 %s58, 16
    %p60 = scmp.gt.s32.totalorder %s59, 16
    %p61 = scmp.le.s32.totalorder %s59, 16
    // Predicated region
    $region22: #{tpu_custom_call.1} parent=1 // pred_check
      %p62 = pneg %p61
    $region23: #{tpu_custom_call.1} parent=1 // pred_check_branch
      %64 = sbr.rel (%p62) target = $region25
    $region24: #{tpu_custom_call.1} parent=1 // pred_region
      %v65 = vld [vmem:[#allocation2] sm:$0xff]
      %v66 = vld [vmem:[#allocation2 + $0x8] sm:$0xff]
      %v67 = vld [vmem:[#allocation5] sm:$0xff]
      %v68 = vld [vmem:[#allocation5 + $0x8] sm:$0xff]
      %v69 = vsub.f32 %v65, %v67
      %v70 = vsub.f32 %v66, %v68
      %v71 = vld [vmem:[#allocation7] sm:$0xff]
      %v72 = vmul.f32 %v69, %v69
      %v73 = vmul.f32 %v70, %v70
      %v74 = vadd.f32 %v72, %v73
      %v75 = vadd.f32 %v71, %v74
      %76 = vst [vmem:[#allocation7] sm:$0xff] %v75
    $region25: #{tpu_custom_call.1} parent=1 // pred_fallthru
      _
    // Predicated region
    $region26: #{tpu_custom_call.1} parent=1 // pred_check
      %p77 = pneg %p60
    $region27: #{tpu_custom_call.1} parent=1 // pred_check_branch
      %79 = sbr.rel (%p77) target = $region29
    $region28: #{tpu_custom_call.1} parent=1 // pred_region
      %v80 = vld [vmem:[#allocation2] sm:$0xff]
      %v81 = vld [vmem:[#allocation2 + $0x8] sm:$0xff]
      %v82 = vld [vmem:[#allocation5] sm:$0xff]
      %v83 = vld [vmem:[#allocation5 + $0x8] sm:$0xff]
      %v84 = vsub.f32 %v80, %v82
      %v85 = vsub.f32 %v81, %v83
      %s86 = sadd.s32 %s58, 0
      %v87 = vlaneseq
      %v88 = vshrl.u32 %v87, 7
      %v89 = vadd.s32 %v88, 8
      %v90 = vstv %s86
      %v91 = vadd.s32 %v90, %v88
      %v92 = vadd.s32 %v90, %v89
      %vm93 = vcmp.lt.s32.totalorder %v91, 16
      %vm94 = vcmp.lt.s32.totalorder %v92, 16
      %v95 = vmul.f32 %v84, %v84
      %v96 = vmul.f32 %v85, %v85
      %v97 = vsel %vm93, %v95, 0.0
      %v98 = vsel %vm94, %v96, 0.0
      %v99 = vld [vmem:[#allocation7] sm:$0xff]
      %v100 = vadd.f32 %v97, %v98
      %v101 = vadd.f32 %v99, %v100
      %102 = vst [vmem:[#allocation7] sm:$0xff] %v101
    $region29: #{tpu_custom_call.1} parent=1 // pred_fallthru
      _
    // Predicated region
    $region30: #{tpu_custom_call.1} parent=1 // pred_check
      _
    $region31: #{tpu_custom_call.1} parent=1 // pred_check_branch
      %104 = sbr.rel (0) target = $region33
    $region32: #{tpu_custom_call.1} parent=1 // pred_region
      %s106 = ssub.s32 128, 128
      %107 = vsyncadd [#allocation4], %s106
      %s109 = sshll.u32 [#allocation7], 4
      %s110 = int_to_ptr.vmem [resolvable:$true] %s109
      %112 = dma.vmem_to_hbm [thread:$0]  %s110, 128, %s2, [#allocation4]
    $region33: #{tpu_custom_call.1} parent=1 // pred_fallthru
      _
    // Predicated region
    $region34: #{tpu_custom_call.1} parent=1 // pred_check
      _
    $region35: #{tpu_custom_call.1} parent=1 // pred_check_branch
      %114 = sbr.rel (0) target = $region37
    $region36: #{tpu_custom_call.1} parent=1 // pred_region
      %115 = dma.done [#allocation4], 128
    $region37: #{tpu_custom_call.1} parent=1 // pred_fallthru
      _
    %116 = vsyncpa [#allocation3], 1
    %117 = vsyncpa [#allocation6], 1
    %118 = vsyncpa [#allocation4], 1

</llo_original>
